<compile_context>
chip_gen: v7x
topology: tpu7x:2x2x1
jax: 0.10.0
libtpu: 0.0.40
codegen_flags: <defaults>
</compile_context>

<pallas_src>
import functools

import jax
import jax.numpy as jnp
from jax.experimental import pallas as pl
from jax.experimental.pallas import tpu as pltpu


def _round_up(x: int, m: int) -> int:
    return ((x + m - 1) // m) * m


def _sublane_align(itemsize: int) -> int:
    # Native packed-sublane tile: f32 -> 8 rows, bf16 -> 16, int8/fp8 -> 32.
    if itemsize >= 4:
        return 8
    if itemsize == 2:
        return 16
    return 32


def _physical_vmem_bytes() -> int:
    try:
        return int(pltpu.get_tpu_info().vmem_capacity_bytes)
    except Exception:
        return 64 * 1024 * 1024  # conservative fallback (v7x per-TC VMEM)


def _pick_tile_n(n: int, c: int, itemsize: int) -> int:
    """Batch tile sized so the in-kernel working set fits the chip's VMEM.

    Working set per row ~= 2 * C * itemsize   (double-buffered native logits DMA)
                         + 4 * C * 4          (~4 f32/int32 (tile_n, C) temporaries:
                                                upcast logits, shifted/exp, iota, select)
    """
    align = _sublane_align(itemsize)
    phys = _physical_vmem_bytes()
    # v7x (64 MiB physical): ~32 MiB budget; v5e/v6e (128 MiB): ~64 MiB budget.
    budget = min(phys // 2, 64 * 1024 * 1024)
    per_row = 2 * c * itemsize + 4 * c * 4
    rows = budget // max(1, per_row)
    rows = max(align, (rows // align) * align)   # sublane-tile alignment
    rows = min(rows, _round_up(n, align))        # never larger than the (padded) batch
    return rows


def _ce_partial_kernel(pre_ref, label_ref, out_ref, *, total_n: int, tile_n: int):
    i = pl.program_id(0)

    # Native-dtype logits tile, upcast once in-kernel (f32 compute on all gens;
    # v5e has no bf16 VPU/EUP path).
    logits = pre_ref[...].astype(jnp.float32)      # (tile_n, C)
    labels = label_ref[...]                        # (tile_n, 1) int32
    tn, c = logits.shape

    # Numerically stable logsumexp over the class (lane) axis; fold row_max back.
    row_max = jnp.max(logits, axis=-1, keepdims=True)                          # (tn, 1)
    sum_exp = jnp.sum(jnp.exp(logits - row_max), axis=-1, keepdims=True)       # (tn, 1)
    lse = jnp.log(sum_exp) + row_max                                           # (tn, 1)

    # Target logit gathered from the RAW logits (iota-compare one-hot select):
    # independent of the max/exp chain, so it overlaps with it.
    cls_idx = jax.lax.broadcasted_iota(jnp.int32, (tn, c), 1)                  # (tn, C)
    picked = jnp.sum(jnp.where(cls_idx == labels, logits, 0.0),
                     axis=-1, keepdims=True)                                   # (tn, 1)
    row_nll = lse - picked                                                     # (tn, 1)

    # Mask garbage rows of the padded last tile.
    row_idx = i * tile_n + jax.lax.broadcasted_iota(jnp.int32, (tn, 1), 0)
    valid = row_idx < total_n
    tile_sum = jnp.sum(jnp.where(valid, row_nll, 0.0), axis=0, keepdims=True)  # (1, 1)

    # Lane-dense (1, 1, 128) partial store. The grid axis is "parallel", so on
    # v7x both TensorCores split the batch; the final reduce is done in JAX.
    out_ref[...] = jnp.broadcast_to(tile_sum.reshape(1, 1, 1), out_ref.shape)


def ce_loss(pre: jax.Array, label: jax.Array, *, tile_n: int | None = None) -> jax.Array:
    """Cross-entropy loss matching torch.nn.CrossEntropyLoss()(pre, label).

    pre:   (N, C) float logits (f32 or bf16 — read in native dtype, upcast in-kernel)
    label: (N,)   int class indices in [0, C)
    returns: scalar float32 mean NLL
    """
    n, c = pre.shape
    itemsize = pre.dtype.itemsize
    align = _sublane_align(itemsize)
    label_col = label.astype(jnp.int32).reshape(n, 1)

    if tile_n is None:
        tile_n = _pick_tile_n(n, c, itemsize)
    tile_n = max(align, (tile_n // align) * align)
    num_tiles = pl.cdiv(n, tile_n)

    # Scoped-VMEM limit from the actual working set (double-buffered native logits
    # + ~4 f32-sized temps + small label/output buffers) with 1.5x headroom, kept
    # below the chip's physical VMEM.
    phys = _physical_vmem_bytes()
    ws = (2 * tile_n * c * itemsize          # double-buffered native logits
          + 4 * tile_n * c * 4               # f32/int32 in-kernel temporaries
          + 2 * tile_n * 4                   # double-buffered labels
          + 2 * 128 * 4 + 4096)              # output blocks + slack
    vmem_limit = int(min(phys * 4 // 5, max(32 * 1024 * 1024, ws * 3 // 2)))

    kernel = functools.partial(_ce_partial_kernel, total_n=n, tile_n=tile_n)

    partials = pl.pallas_call(
        kernel,
        out_shape=jax.ShapeDtypeStruct((num_tiles, 1, 128), jnp.float32),
        grid_spec=pltpu.PrefetchScalarGridSpec(
            num_scalar_prefetch=0,
            grid=(num_tiles,),
            in_specs=[
                pl.BlockSpec((tile_n, c), lambda i: (i, 0)),     # logits row-tile
                pl.BlockSpec((tile_n, 1), lambda i: (i, 0)),     # label column tile
            ],
            out_specs=pl.BlockSpec((1, 1, 128), lambda i: (i, 0, 0)),  # per-tile partial
        ),
        compiler_params=pltpu.CompilerParams(
            dimension_semantics=("parallel",),   # independent tiles -> megacore on v7x
            vmem_limit_bytes=vmem_limit,
        ),
    )(pre, label_col)

    # Final reduce + mean in plain JAX (num_tiles scalars; negligible).
    # TODO(synk): large-vocab variant (tile C with an online-logsumexp inner
    # 'arbitrary' grid axis) is not implemented; current kernel keeps full C per row tile.
    return jnp.sum(partials[:, 0, 0]) * (1.0 / jnp.float32(n))


def _reference_ce(pre, label):
    # Pure-JAX reference.
    logp = jax.nn.log_softmax(pre.astype(jnp.float32), axis=-1)
    nll = -jnp.take_along_axis(logp, label[:, None].astype(jnp.int32), axis=-1)[:, 0]
    return jnp.mean(nll)


if __name__ == "__main__":
    key = jax.random.PRNGKey(0)
    k_logits, k_labels = jax.random.split(key)

    # Small shapes: batch=20 (deliberately NOT a multiple of the tile so the
    # padded-row masking path is exercised), classes=160.
    N, C = 20, 160
    pre = jax.random.normal(k_logits, (N, C), dtype=jnp.float32)
    label = jax.random.randint(k_labels, (N,), 0, C, dtype=jnp.int32)

    ref = _reference_ce(pre, label)

    # Tiled path: grid of 3 parallel steps (8, 8, 4 rows padded to 8), last tile masked.
    loss_tiled = ce_loss(pre, label, tile_n=8)
    jax.block_until_ready(loss_tiled)
    assert jnp.allclose(loss_tiled, ref, atol=1e-5, rtol=1e-5), (loss_tiled, ref)

    # Auto-picked tile (single padded block for this small shape).
    loss_auto = ce_loss(pre, label)
    jax.block_until_ready(loss_auto)
    assert jnp.allclose(loss_auto, ref, atol=1e-5, rtol=1e-5), (loss_auto, ref)

    # Native bf16 logits: tile_n aligned up to 16 (bf16 sublane packing),
    # upcast happens in-kernel, no wrapper-side f32 copy.
    pre_bf16 = pre.astype(jnp.bfloat16)
    ref_bf16 = _reference_ce(pre_bf16, label)
    loss_bf16 = ce_loss(pre_bf16, label, tile_n=8)
    jax.block_until_ready(loss_bf16)
    assert jnp.allclose(loss_bf16, ref_bf16, atol=1e-5, rtol=1e-5), (loss_bf16, ref_bf16)

    print("KERNEL_OK")
</pallas_src>

<mosaic_0001>
module attributes {stable_mosaic.version = 11 : i64} {
  func.func @_ce_partial_kernel(%arg0: i32, %arg1: memref<8x160xf32, #tpu.memory_space<vmem>>, %arg2: memref<8x1xi32, #tpu.memory_space<vmem>>, %arg3: memref<1x1x128xf32, #tpu.memory_space<vmem>>) attributes {dimension_semantics = [#tpu.dimension_semantics<parallel>], iteration_bounds = array<i64: 3>, scalar_prefetch = 0 : i64, scratch_operands = 0 : i64, tpu.core_type = #tpu.core_type<tc>, window_params = [{transform_indices = @transform_0, window_bounds = array<i64: 8, 160>}, {transform_indices = @transform_1, window_bounds = array<i64: 8, 1>}, {transform_indices = @transform_2, window_bounds = array<i64: 1, 1, 128>}]} {
    %c0 = arith.constant 0 : index
    %c0_0 = arith.constant 0 : index
    %0 = vector.load %arg1[%c0, %c0_0] : memref<8x160xf32, #tpu.memory_space<vmem>>, vector<8x160xf32>
    %c0_1 = arith.constant 0 : index
    %c0_2 = arith.constant 0 : index
    %1 = vector.load %arg2[%c0_1, %c0_2] : memref<8x1xi32, #tpu.memory_space<vmem>>, vector<8x1xi32>
    %cst = arith.constant dense<0xFF800000> : vector<8xf32>
    %2 = vector.multi_reduction <maximumf>, %0, %cst [1] : vector<8x160xf32> to vector<8xf32>
    %3 = vector.shape_cast %2 : vector<8xf32> to vector<8x1xf32>
    %4 = vector.broadcast %3 : vector<8x1xf32> to vector<8x160xf32>
    %5 = arith.subf %0, %4 : vector<8x160xf32>
    %6 = math.exp %5 : vector<8x160xf32>
    %cst_3 = arith.constant dense<0.000000e+00> : vector<8xf32>
    %7 = vector.multi_reduction <add>, %6, %cst_3 [1] : vector<8x160xf32> to vector<8xf32>
    %8 = vector.shape_cast %7 : vector<8xf32> to vector<8x1xf32>
    %9 = math.log %8 : vector<8x1xf32>
    %10 = arith.addf %9, %3 : vector<8x1xf32>
    %11 = tpu.iota {dimensions = array<i32: 1>} : vector<8x160xi32>
    %12 = vector.broadcast %1 : vector<8x1xi32> to vector<8x160xi32>
    %13 = arith.cmpi eq, %11, %12 : vector<8x160xi32>
    %cst_4 = arith.constant 0.000000e+00 : f32
    %14 = vector.broadcast %cst_4 : f32 to vector<8x160xf32>
    %15 = arith.select %13, %0, %14 : vector<8x160xi1>, vector<8x160xf32>
    %cst_5 = arith.constant dense<0.000000e+00> : vector<8xf32>
    %16 = vector.multi_reduction <add>, %15, %cst_5 [1] : vector<8x160xf32> to vector<8xf32>
    %17 = vector.shape_cast %16 : vector<8xf32> to vector<8x1xf32>
    %18 = arith.subf %10, %17 : vector<8x1xf32>
    %c8_i32 = arith.constant 8 : i32
    %19 = arith.muli %arg0, %c8_i32 : i32
    %20 = tpu.iota {dimensions = array<i32: 0>} : vector<8x1xi32>
    %21 = vector.broadcast %19 : i32 to vector<8x1xi32>
    %22 = arith.addi %21, %20 : vector<8x1xi32>
    %c20_i32 = arith.constant 20 : i32
    %23 = vector.broadcast %c20_i32 : i32 to vector<8x1xi32>
    %24 = arith.cmpi slt, %22, %23 : vector<8x1xi32>
    %cst_6 = arith.constant 0.000000e+00 : f32
    %25 = vector.broadcast %cst_6 : f32 to vector<8x1xf32>
    %26 = arith.select %24, %18, %25 : vector<8x1xi1>, vector<8x1xf32>
    %cst_7 = arith.constant dense<0.000000e+00> : vector<1xf32>
    %27 = vector.multi_reduction <add>, %26, %cst_7 [0] : vector<8x1xf32> to vector<1xf32>
    %28 = vector.shape_cast %27 : vector<1xf32> to vector<1x1xf32>
    %29 = vector.shape_cast %28 : vector<1x1xf32> to vector<1x1x1xf32>
    %30 = vector.shape_cast %29 : vector<1x1x1xf32> to vector<1x1x1xf32>
    %31 = vector.broadcast %30 : vector<1x1x1xf32> to vector<1x1x128xf32>
    %c0_8 = arith.constant 0 : index
    %c0_9 = arith.constant 0 : index
    %c0_10 = arith.constant 0 : index
    %32 = vector.load %arg3[%c0_8, %c0_9, %c0_10] : memref<1x1x128xf32, #tpu.memory_space<vmem>>, vector<1x1x128xf32>
    tpu.vector_store %arg3[%c0_8, %c0_9, %c0_10], %31 {strides = array<i32>} : memref<1x1x128xf32, #tpu.memory_space<vmem>>, vector<1x1x128xf32>,
    return
  }
  func.func @transform_0(%arg0: i32) -> (i32, i32) {
    %c0_i32 = arith.constant 0 : i32
    %c0_i32_0 = arith.constant 0 : i32
    return %arg0, %c0_i32 : i32, i32
  }
  func.func @transform_1(%arg0: i32) -> (i32, i32) {
    %c0_i32 = arith.constant 0 : i32
    %c0_i32_0 = arith.constant 0 : i32
    return %arg0, %c0_i32 : i32, i32
  }
  func.func @transform_2(%arg0: i32) -> (i32, i32, i32) {
    %c0_i32 = arith.constant 0 : i32
    %c0_i32_0 = arith.constant 0 : i32
    %c0_i32_1 = arith.constant 0 : i32
    return %arg0, %c0_i32, %c0_i32_0 : i32, i32, i32
  }
}

</mosaic_0001>

<llo_original>
// kernel: tpu_custom_call.1
$region0: #{tpu_custom_call.1}
  #allocation0 [shape = 'u32[]', space=smem, size = 0x4, offset = 0x4, fixed_abs, tag = 'smem constant byte address 0x4 - core index']
  #allocation1 [shape = 'u32[144,128]{1,0:T(1,128)}', space=vmem, size = 0x12000, scoped, tag = 'internal scratch']
  %s0 = inlined_call_operand.hbm [shape: f32[20,160], index: 0, kind: input, shape index: {}]
  %s1 = inlined_call_operand.vmem [shape: s32[20,1], index: 1, kind: input, shape index: {}]
  %s2 = inlined_call_operand.hbm [shape: f32[3,1,128], index: 2, kind: output, shape index: {}]
  %s3 = sld [smem:[#allocation0]]
  $region45: #{tpu_custom_call.1} parent=0
    _
  %s5 = ssub.s32 1, %s3
  %s6 = scalar_select 0, %s5, %s3
  $region1: #{tpu_custom_call.1} parent=0
    #allocation2 [shape = 'u8[16384]{0}', space=vmem, size = 0x4000, scoped, tag = 'input window, operand 0']
    #allocation3 [shape = 's32[2]{0}', space=sflag, size = 0x8, scoped, tag = 'scoped memory for tpu_custom_call.1']
    #allocation4 [shape = 's32[2]{0}', space=sflag, size = 0x8, scoped, tag = 'scoped memory for tpu_custom_call.1']
    #allocation5 [shape = 'u8[1024]{0}', space=vmem, size = 0x400, scoped, tag = 'output window, operand 0']
    %7 = vsyncpa [#allocation3], 0
    %s8 = scalar_lea.sflag [#allocation3], 1
    %9 = vsyncpa %s8, 0
    %10 = vsyncpa [#allocation4], 0
    %s11 = scalar_lea.sflag [#allocation4], 1
    %12 = vsyncpa %s11, 0
    loop: start=0, step=1, limit=5
    $region2: #{tpu_custom_call.1} parent=1 // loop_pre_header
      _
    $region3: #{tpu_custom_call.1} parent=1 // loop_header
      %s14 = sphi 0, %s18
      %p15 = scmp.ge.s32.totalorder %s14, 5
      %s24 = sphi 0, %s26
      %s27 = sphi 0, %s24
      %s28 = sphi 0, %s27
      %s44 = sphi 0, %s28
      %s50 = sphi 0, %s52
      %s53 = sphi 0, %s50
      %s54 = sphi 0, %s53
      %s70 = sphi 0, %s54
      %s76 = sphi 0, %s78
      %s79 = sphi 0, %s76
      %s80 = sphi 0, %s79
      %s96 = sphi 0, %s80
    $region4: #{tpu_custom_call.1} parent=1 // loop_header_branch
      %17 = sbr.rel (%p15) target = $region8
    $region5: #{tpu_custom_call.1} parent=1 // loop_body
      %s19 = ssub.s32 %s14, 1
      %s20 = ssub.s32 %s14, 2
      %s21 = sadd.s32 %s14, 1
      %s22 = ssub.s32 %s14, %s21
      %p23 = scmp.eq.s32.totalorder %s22, 0
      %s25 = sadd.s32 %s24, 1
      %s26 = scalar_select %p23, %s24, %s25
      %p29 = pneg %p23
      %p30 = scmp.eq.s32.totalorder %s14, 2
      %p31 = por %p29, %p30
      %p32 = scmp.ne.s32.totalorder %s24, %s27
      %p33 = scmp.eq.s32.totalorder %s14, 0
      %p34 = por %p32, %p33
      %p35 = scmp.ne.s32.totalorder %s24, %s27
      %p36 = scmp.eq.s32.totalorder %s19, 2
      %p37 = por %p35, %p36
      %p38 = scmp.ne.s32.totalorder %s27, %s28
      %p39 = scmp.eq.s32.totalorder %s19, 0
      %p40 = por %p38, %p39
      %p41 = scmp.ne.s32.totalorder %s27, %s28
      %p42 = scmp.eq.s32.totalorder %s20, 2
      %p43 = por %p41, %p42
      %p45 = scmp.ne.s32.totalorder %s28, %s44
      %p46 = scmp.eq.s32.totalorder %s20, 0
      %p47 = por %p45, %p46
      %s48 = ssub.s32 %s14, %s21
      %p49 = scmp.eq.s32.totalorder %s48, 0
      %s51 = sadd.s32 %s50, 1
      %s52 = scalar_select %p49, %s50, %s51
      %p55 = pneg %p49
      %p56 = scmp.eq.s32.totalorder %s14, 2
      %p57 = por %p55, %p56
      %p58 = scmp.ne.s32.totalorder %s50, %s53
      %p59 = scmp.eq.s32.totalorder %s14, 0
      %p60 = por %p58, %p59
      %p61 = scmp.ne.s32.totalorder %s50, %s53
      %p62 = scmp.eq.s32.totalorder %s19, 2
      %p63 = por %p61, %p62
      %p64 = scmp.ne.s32.totalorder %s53, %s54
      %p65 = scmp.eq.s32.totalorder %s19, 0
      %p66 = por %p64, %p65
      %p67 = scmp.ne.s32.totalorder %s53, %s54
      %p68 = scmp.eq.s32.totalorder %s20, 2
      %p69 = por %p67, %p68
      %p71 = scmp.ne.s32.totalorder %s54, %s70
      %p72 = scmp.eq.s32.totalorder %s20, 0
      %p73 = por %p71, %p72
      %s74 = ssub.s32 %s14, %s21
      %p75 = scmp.eq.s32.totalorder %s74, 0
      %s77 = sadd.s32 %s76, 1
      %s78 = scalar_select %p75, %s76, %s77
      %p81 = pneg %p75
      %p82 = scmp.eq.s32.totalorder %s14, 2
      %p83 = por %p81, %p82
      %p84 = scmp.ne.s32.totalorder %s76, %s79
      %p85 = scmp.eq.s32.totalorder %s14, 0
      %p86 = por %p84, %p85
      %p87 = scmp.ne.s32.totalorder %s76, %s79
      %p88 = scmp.eq.s32.totalorder %s19, 2
      %p89 = por %p87, %p88
      %p90 = scmp.ne.s32.totalorder %s79, %s80
      %p91 = scmp.eq.s32.totalorder %s19, 0
      %p92 = por %p90, %p91
      %p93 = scmp.ne.s32.totalorder %s79, %s80
      %p94 = scmp.eq.s32.totalorder %s20, 2
      %p95 = por %p93, %p94
      %p97 = scmp.ne.s32.totalorder %s80, %s96
      %p98 = scmp.eq.s32.totalorder %s20, 0
      %p99 = por %p97, %p98
      %p100 = scmp.le.s32.totalorder 1, %s14
      %p101 = scmp.lt.s32.totalorder %s14, 4
      %p102 = pnand %p100, %p101
      %p103 = pneg %p102
      // Predicated region
      $region9: #{tpu_custom_call.1} parent=5 // pred_check
        _
      $region10: #{tpu_custom_call.1} parent=5 // pred_check_branch
        %105 = sbr.rel (%p102) target = $region12
      $region11: #{tpu_custom_call.1} parent=5 // pred_region
        %s106 = ssub.s32 %s14, 1
      $region12: #{tpu_custom_call.1} parent=5 // pred_fallthru
        _
      %p107 = scmp.lt.s32.totalorder %s14, 3
      // Predicated region
      $region13: #{tpu_custom_call.1} parent=5 // pred_check
        %p108 = pneg %p107
      $region14: #{tpu_custom_call.1} parent=5 // pred_check_branch
        %110 = sbr.rel (%p108) target = $region16
      $region15: #{tpu_custom_call.1} parent=5 // pred_region
        // Predicated region
        $region17: #{tpu_custom_call.1} parent=15 // pred_check
          %p111 = pneg %p34
        $region18: #{tpu_custom_call.1} parent=15 // pred_check_branch
          %113 = sbr.rel (%p111) target = $region20
        $region19: #{tpu_custom_call.1} parent=15 // pred_region
          %s114 = sand.u32 %s24, 1
          %s115 = scalar_lea.sflag [#allocation3], %s114
          %s116 = sand.u32 %s24, 1
          %s117 = smul.addr %s116, 16
          %s118 = scalar_lea.vmem [#allocation2], %s117
          %s120 = ssub.s32 256, 256
          %121 = vsyncadd %s115, %s120
          %s122 = smul.addr %s14, 2
          %s123 = smul.addr %s122, 128
          %s124 = scalar_lea.hbm %s0, %s123
          %s126 = sshll.u32 %s118, 4
          %s127 = int_to_ptr.vmem [resolvable:$true] %s126
          %129 = dma.hbm_to_vmem [thread:$0]  %s124, 256, %s127, %s115
        $region20: #{tpu_custom_call.1} parent=15 // pred_fallthru
          _
        // Predicated region
        $region21: #{tpu_custom_call.1} parent=15 // pred_check
          %p130 = pneg %p60
        $region22: #{tpu_custom_call.1} parent=15 // pred_check_branch
          %132 = sbr.rel (%p130) target = $region24
        $region23: #{tpu_custom_call.1} parent=15 // pred_region
          %p133 = scmp.lt.s32.totalorder %s14, 2
          %s134 = scalar_select %p133, %s14, 2
          %s135 = smul.addr %s134, 8
          %s136 = scalar_lea.vmem %s1, %s135
        $region24: #{tpu_custom_call.1} parent=15 // pred_fallthru
          _
      $region16: #{tpu_custom_call.1} parent=5 // pred_fallthru
        _
      %p137 = scmp.le.s32.totalorder 1, %s14
      %p138 = scmp.lt.s32.totalorder %s14, 4
      %p139 = pnand %p137, %p138
      %p140 = pneg %p139
      // Predicated region
      $region25: #{tpu_custom_call.1} parent=5 // pred_check
        _
      $region26: #{tpu_custom_call.1} parent=5 // pred_check_branch
        %142 = sbr.rel (%p139) target = $region28
      $region27: #{tpu_custom_call.1} parent=5 // pred_region
        %s143 = ssub.s32 %s14, 1
        %s144 = sand.u32 %s27, 1
        %s145 = scalar_lea.sflag [#allocation3], %s144
        %s146 = sand.u32 %s27, 1
        %s147 = smul.addr %s146, 16
        %s148 = scalar_lea.vmem [#allocation2], %s147
        // Predicated region
        $region29: #{tpu_custom_call.1} parent=27 // pred_check
          %p149 = pneg %p40
        $region30: #{tpu_custom_call.1} parent=27 // pred_check_branch
          %151 = sbr.rel (%p149) target = $region32
        $region31: #{tpu_custom_call.1} parent=27 // pred_region
          %152 = dma.done %s145, 256
        $region32: #{tpu_custom_call.1} parent=27 // pred_fallthru
          _
        %s153 = sand.u32 %s27, 1
        %s154 = scalar_lea.sflag [#allocation3], %s153
        %s155 = sand.u32 %s27, 1
        %s156 = smul.addr %s155, 16
        %s157 = scalar_lea.vmem [#allocation2], %s156
        %p158 = pneg %p40
        %p159 = pneg %p37
        %p160 = scmp.lt.s32.totalorder %s19, 2
        %s161 = scalar_select %p160, %s19, 2
        %s162 = smul.addr %s161, 8
        %s163 = scalar_lea.vmem %s1, %s162
        %p164 = pneg %p66
        %p165 = pneg %p63
        %p166 = pneg %p92
        %p167 = pneg %p89
        %s168 = sand.u32 %s79, 1
        %s169 = scalar_lea.sflag [#allocation4], %s168
        %s170 = sand.u32 %s79, 1
        %s171 = scalar_lea.vmem [#allocation5], %s170
        %p172 = scmp.lt.s32.totalorder %s19, 2
        %s173 = scalar_select %p172, %s19, 2
        %s174 = smul.addr %s173, 8
        %s175 = scalar_lea.vmem %s1, %s174
        %v176 = vld [vmem:[%s148] sm:$0xff]
        %v177 = vld [vmem:[%s148 + $0x8] sm:$0xff]
        %v178 = vld [vmem:[%s175] sm:$0xff]
        %vm179 = vcmask 261120
        %v180 = vsel %vm179, %v177, -inf
        %v181 = vmax.f32 %v176, %v180
        %182 = vmax.xlane.f32.xlu0 %v181
        %v183 = vpop.xlane.xlu0 %182
        %v184 = vsub.f32 %v176, %v183
        %v185 = vsub.f32 %v177, %v183
        %v186 = vmul.f32 %v184, 1.442695
        %v187 = vpow.pop %v186
        %v188 = vmul.f32 %v185, 1.442695
        %v189 = vpow.pop %v188
        %v190 = vsel %vm179, %v189, 0.0
        %v191 = vadd.f32 %v187, %v190
        %192 = vadd.xlane.f32.xlu0 %v191
        %v193 = vpop.xlane.xlu0 %192
        %v194 = vlog2.pop %v193
        %v195 = vmul.f32 %v194, 0.6931472
        %v196 = vadd.f32 %v195, %v183
        %v197 = vlaneseq
        %v198 = vand.u32 %v197, 127
        %v199 = vadd.s32 %v198, 128
        %200 = vset.pattern.permute.xlu0 0
        %201 = vperm.xlu0 %200, %v178
        %v202 = vpop.permute.xlu0 %201
        %vm203 = vcmp.eq.s32.totalorder %v198, %v202
        %vm204 = vcmp.eq.s32.totalorder %v199, %v202
        %v205 = vsel %vm203, %v176, 0.0
        %v206 = vsel %vm204, %v177, 0.0
        %v207 = vsel %vm179, %v206, 0.0
        %v208 = vadd.f32 %v205, %v207
        %209 = vadd.xlane.f32.xlu0 %v208
        %v210 = vpop.xlane.xlu0 %209
        %v211 = vsub.f32 %v196, %v210
        %s212 = smul.u32 %s19, 8
        %v213 = vlaneseq
        %v214 = vshrl.u32 %v213, 7
        %v215 = vstv %s212
        %v216 = vadd.s32 %v215, %v214
        %vm217 = vcmp.lt.s32.totalorder %v216, 20
        %v218 = vsel %vm217, %v211, 0.0
        %v219 = vrot.slane %v218, 4
        %v220 = vadd.f32 %v218, %v219
        %v221 = vrot.slane %v220, 2
        %v222 = vadd.f32 %v220, %v221
        %v223 = vrot.slane %v222, 1
        %v224 = vadd.f32 %v222, %v223
        %225 = vst [vmem:[%s171] sm:$0x1] %v224
        %s226 = sand.u32 %s79, 1
        %s227 = scalar_lea.sflag [#allocation4], %s226
        %s228 = sand.u32 %s79, 1
        %s229 = scalar_lea.vmem [#allocation5], %s228
        // Predicated region
        $region33: #{tpu_custom_call.1} parent=27 // pred_check
          %p230 = pneg %p89
        $region34: #{tpu_custom_call.1} parent=27 // pred_check_branch
          %232 = sbr.rel (%p230) target = $region36
        $region35: #{tpu_custom_call.1} parent=27 // pred_region
          %s234 = ssub.s32 16, 16
          %235 = vsyncadd %s227, %s234
          %s236 = smul.addr %s19, 16
          %s237 = scalar_lea.hbm %s2, %s236
          %s239 = sshll.u32 %s229, 4
          %s240 = int_to_ptr.vmem [resolvable:$true] %s239
          %242 = dma.vmem_to_hbm [thread:$0]  %s240, 16, %s237, %s227
        $region36: #{tpu_custom_call.1} parent=27 // pred_fallthru
          _
      $region28: #{tpu_custom_call.1} parent=5 // pred_fallthru
        _
      %p243 = scmp.le.s32.totalorder 2, %s14
      // Predicated region
      $region37: #{tpu_custom_call.1} parent=5 // pred_check
        %p244 = pneg %p243
      $region38: #{tpu_custom_call.1} parent=5 // pred_check_branch
        %246 = sbr.rel (%p244) target = $region40
      $region39: #{tpu_custom_call.1} parent=5 // pred_region
        %s247 = ssub.s32 %s14, 2
        // Predicated region
        $region41: #{tpu_custom_call.1} parent=39 // pred_check
          %p248 = pneg %p95
        $region42: #{tpu_custom_call.1} parent=39 // pred_check_branch
          %250 = sbr.rel (%p248) target = $region44
        $region43: #{tpu_custom_call.1} parent=39 // pred_region
          %s251 = sand.u32 %s80, 1
          %s252 = scalar_lea.sflag [#allocation4], %s251
          %s253 = sand.u32 %s80, 1
          %s254 = scalar_lea.vmem [#allocation5], %s253
          %255 = dma.done %s252, 16
        $region44: #{tpu_custom_call.1} parent=39 // pred_fallthru
          _
      $region40: #{tpu_custom_call.1} parent=5 // pred_fallthru
        _
    $region6: #{tpu_custom_call.1} parent=1 // loop_footer
      %s18 = sadd.s32 1, %s14
    $region7: #{tpu_custom_call.1} parent=1 // loop_footer_branch
      %13 = sbr.rel target = $region3
    $region8: #{tpu_custom_call.1} parent=1 // loop_exit
      _
    %256 = vsyncpa [#allocation3], 1
    %s257 = scalar_lea.sflag [#allocation3], 1
    %258 = vsyncpa %s257, 1
    %259 = vsyncpa [#allocation4], 1
    %s260 = scalar_lea.sflag [#allocation4], 1
    %261 = vsyncpa %s260, 1

</llo_original>
